<compile_context>
chip_gen: v6e
topology: v6e:2x2x1
jax: 0.10.0
libtpu: 0.0.40
codegen_flags: <defaults>
</compile_context>

<pallas_src>
import math
import functools

import jax
import jax.numpy as jnp
from jax.experimental import pallas as pl
from jax.experimental.pallas import tpu as pltpu


def _round_up(x, m):
    return ((x + m - 1) // m) * m


# ----------------------------------------------------------------------------
# Tiled linear:  y = x @ Wt (+ b),  x: (M, K), Wt: (K, N), b: (1, N)
# ----------------------------------------------------------------------------

def _linear_kernel(x_ref, wt_ref, b_ref, o_ref, acc_ref):
    k_id = pl.program_id(2)

    @pl.when(k_id == 0)
    def _():
        acc_ref[...] = jnp.zeros_like(acc_ref)

    acc_ref[...] += jnp.dot(x_ref[...], wt_ref[...],
                            preferred_element_type=jnp.float32)

    @pl.when(k_id == pl.num_programs(2) - 1)
    def _():
        acc = acc_ref[...] + b_ref[...].astype(jnp.float32)
        o_ref[...] = acc.astype(o_ref.dtype)


def pallas_linear(x2d, wt, bias=None, *, tm_max=256, tn_max=256, tk_max=512):
    """y = x2d @ wt (+ bias).  x2d: (M, K); wt: (K, N); bias: (N,) or None."""
    M, K = x2d.shape
    K2, N = wt.shape
    assert K == K2
    out_dtype = x2d.dtype

    # MXU-friendly tiles, shrunk for small problems (keep (8,128) granularity).
    tm = min(tm_max, _round_up(M, 8))
    tn = min(tn_max, _round_up(N, 128))
    tk = min(tk_max, _round_up(K, 128))
    Mp, Np, Kp = _round_up(M, tm), _round_up(N, tn), _round_up(K, tk)

    xp = x2d if (Mp, Kp) == (M, K) else jnp.pad(x2d, ((0, Mp - M), (0, Kp - K)))
    wtp = wt if (Kp, Np) == (K, N) else jnp.pad(wt, ((0, Kp - K), (0, Np - N)))
    if bias is None:
        b2 = jnp.zeros((1, Np), out_dtype)
    else:
        b2 = bias.reshape(1, N)
        if Np != N:
            b2 = jnp.pad(b2, ((0, 0), (0, Np - N)))

    out = pl.pallas_call(
        _linear_kernel,
        out_shape=jax.ShapeDtypeStruct((Mp, Np), out_dtype),
        grid_spec=pltpu.PrefetchScalarGridSpec(
            num_scalar_prefetch=0,
            grid=(Mp // tm, Np // tn, Kp // tk),
            in_specs=[
                pl.BlockSpec((tm, tk), lambda i, j, k: (i, k)),
                pl.BlockSpec((tk, tn), lambda i, j, k: (k, j)),
                pl.BlockSpec((1, tn), lambda i, j, k: (0, j)),
            ],
            out_specs=pl.BlockSpec((tm, tn), lambda i, j, k: (i, j)),
            scratch_shapes=[pltpu.VMEM((tm, tn), jnp.float32)],
        ),
        compiler_params=pltpu.CompilerParams(
            dimension_semantics=("parallel", "parallel", "arbitrary")),
    )(xp, wtp, b2)

    if (Mp, Np) != (M, N):
        out = out[:M, :N]
    return out


# ----------------------------------------------------------------------------
# Flash-style attention:  softmax(q k^T * scale) v  per (batch*head)
# ----------------------------------------------------------------------------

def _flash_attn_kernel(q_ref, k_ref, v_ref, o_ref, m_sc, l_sc, acc_sc, *,
                       scale, nk_valid, tkv, needs_mask):
    ki = pl.program_id(2)

    @pl.when(ki == 0)
    def _():
        m_sc[...] = jnp.full_like(m_sc, -1e30)
        l_sc[...] = jnp.zeros_like(l_sc)
        acc_sc[...] = jnp.zeros_like(acc_sc)

    # Pre-scale q (O(Nq*D) instead of O(Nq*Nk)); keep native dtype for the MXU.
    q = q_ref[0] * scale                  # (tq, D)
    k = k_ref[0]                          # (tkv, D)
    v = v_ref[0]                          # (tkv, D)

    # q @ k^T without materializing a transpose of k.
    s = jax.lax.dot_general(q, k, (((1,), (1,)), ((), ())),
                            preferred_element_type=jnp.float32)   # (tq, tkv)

    if needs_mask:
        kpos = ki * tkv + jax.lax.broadcasted_iota(jnp.int32, s.shape, 1)
        s = jnp.where(kpos < nk_valid, s, -1e30)

    m_prev = m_sc[...]
    m_new = jnp.maximum(m_prev, jnp.max(s, axis=-1, keepdims=True))
    alpha = jnp.exp(m_prev - m_new)
    p = jnp.exp(s - m_new)                # unnormalized probabilities

    l_sc[...] = alpha * l_sc[...] + jnp.sum(p, axis=-1, keepdims=True)
    acc_sc[...] = alpha * acc_sc[...] + jax.lax.dot_general(
        p.astype(v.dtype), v, (((1,), (0,)), ((), ())),
        preferred_element_type=jnp.float32)
    m_sc[...] = m_new

    @pl.when(ki == pl.num_programs(2) - 1)
    def _():
        # Deferred normalization on the (tq, D) output (EUP reciprocal).
        inv = pl.reciprocal(l_sc[...], approx=True)
        o_ref[0] = (acc_sc[...] * inv).astype(o_ref.dtype)


def pallas_attention(q, k, v, scale, *, tq_max=256, tkv_max=512):
    """q: (BH, Nq, D), k/v: (BH, Nk, D) -> (BH, Nq, D)."""
    BH, Nq, D = q.shape
    Nk = k.shape[1]

    tq = min(tq_max, _round_up(Nq, 8))
    tkv = min(tkv_max, _round_up(Nk, 8))
    Nq_p = _round_up(Nq, tq)
    Nk_p = _round_up(Nk, tkv)

    qp = q if Nq_p == Nq else jnp.pad(q, ((0, 0), (0, Nq_p - Nq), (0, 0)))
    kp = k if Nk_p == Nk else jnp.pad(k, ((0, 0), (0, Nk_p - Nk), (0, 0)))
    vp = v if Nk_p == Nk else jnp.pad(v, ((0, 0), (0, Nk_p - Nk), (0, 0)))

    kernel = functools.partial(_flash_attn_kernel, scale=scale,
                               nk_valid=Nk, tkv=tkv,
                               needs_mask=(Nk_p != Nk))
    out = pl.pallas_call(
        kernel,
        out_shape=jax.ShapeDtypeStruct((BH, Nq_p, D), q.dtype),
        grid_spec=pltpu.PrefetchScalarGridSpec(
            num_scalar_prefetch=0,
            grid=(BH, Nq_p // tq, Nk_p // tkv),
            in_specs=[
                pl.BlockSpec((1, tq, D), lambda h, qi, ki: (h, qi, 0)),
                pl.BlockSpec((1, tkv, D), lambda h, qi, ki: (h, ki, 0)),
                pl.BlockSpec((1, tkv, D), lambda h, qi, ki: (h, ki, 0)),
            ],
            out_specs=pl.BlockSpec((1, tq, D), lambda h, qi, ki: (h, qi, 0)),
            scratch_shapes=[
                pltpu.VMEM((tq, 1), jnp.float32),   # running max
                pltpu.VMEM((tq, 1), jnp.float32),   # running denom
                pltpu.VMEM((tq, D), jnp.float32),   # running output acc
            ],
        ),
        compiler_params=pltpu.CompilerParams(
            dimension_semantics=("parallel", "parallel", "arbitrary")),
    )(qp, kp, vp)

    if Nq_p != Nq:
        out = out[:, :Nq, :]
    return out


# ----------------------------------------------------------------------------
# Module-equivalent forward
# ----------------------------------------------------------------------------

class MemoryEfficientCrossAttentionPallas:
    def __init__(self, query_dim, context_dim=None, heads=8, dim_head=64,
                 dropout=0.0, zero_init=False, key=None):
        inner_dim = dim_head * heads
        context_dim = query_dim if context_dim is None else context_dim
        self.heads = heads
        self.dim_head = dim_head
        self.query_dim = query_dim
        self.context_dim = context_dim
        self.inner_dim = inner_dim

        if key is None:
            key = jax.random.PRNGKey(0)
        kq, kk, kv, ko, kb = jax.random.split(key, 5)

        # Deterministic init (PyTorch weight layout: (out_features, in_features)).
        def init_w(k, out_f, in_f):
            bound = 1.0 / math.sqrt(in_f)
            return jax.random.uniform(k, (out_f, in_f), jnp.float32,
                                      minval=-bound, maxval=bound)

        self.w_q = init_w(kq, inner_dim, query_dim)
        self.w_k = init_w(kk, inner_dim, context_dim)
        self.w_v = init_w(kv, inner_dim, context_dim)
        if zero_init:
            self.w_out = jnp.zeros((query_dim, inner_dim), jnp.float32)
            self.b_out = jnp.zeros((query_dim,), jnp.float32)
        else:
            self.w_out = init_w(ko, query_dim, inner_dim)
            bound = 1.0 / math.sqrt(inner_dim)
            self.b_out = jax.random.uniform(kb, (query_dim,), jnp.float32,
                                            minval=-bound, maxval=bound)

        # Pre-transposed / fused weights for the Pallas matmuls.
        self.wt_q = self.w_q.T                                        # (Dq, I)
        self.wt_kv = jnp.concatenate([self.w_k, self.w_v], axis=0).T  # (Dc, 2I)
        if context_dim == query_dim:
            self.wt_qkv = jnp.concatenate(
                [self.w_q, self.w_k, self.w_v], axis=0).T             # (Dq, 3I)
        else:
            self.wt_qkv = None
        self.wt_out = self.w_out.T                                    # (I, Dq)
        # Dropout is identity in eval mode (and dropout=0.0 default).

    def __call__(self, x, context=None, mask=None):
        if mask is not None:
            raise NotImplementedError
        b, n, _ = x.shape
        h, d = self.heads, self.dim_head
        inner = self.inner_dim

        if context is None:
            # Self-attention: one fused QKV matmul over x.
            m = n
            qkv = pallas_linear(x.reshape(b * n, self.query_dim), self.wt_qkv)
            q, k, v = jnp.split(qkv, [inner, 2 * inner], axis=-1)
        else:
            # Cross-attention: fuse K and V over context.
            m = context.shape[1]
            q = pallas_linear(x.reshape(b * n, self.query_dim), self.wt_q)
            kv = pallas_linear(context.reshape(b * m, self.context_dim),
                               self.wt_kv)
            k, v = jnp.split(kv, [inner], axis=-1)

        # (b*seq, h*d) -> (b*h, seq, d)   (same permute/reshape as the module)
        # TODO(synk): fold these head-split transposes into the attention
        # kernel's BlockSpecs to save the extra HBM passes.
        def split_heads(t, seq):
            return (t.reshape(b, seq, h, d)
                     .transpose(0, 2, 1, 3)
                     .reshape(b * h, seq, d))

        q = split_heads(q, n)
        k = split_heads(k, m)
        v = split_heads(v, m)

        scale = 1.0 / math.sqrt(d)
        out = pallas_attention(q, k, v, scale)          # (b*h, n, d)

        # (b*h, n, d) -> (b*n, h*d)
        out = (out.reshape(b, h, n, d)
                  .transpose(0, 2, 1, 3)
                  .reshape(b * n, h * d))

        # to_out: Linear(inner_dim, query_dim) with bias (+ Dropout == identity).
        y = pallas_linear(out, self.wt_out, self.b_out)
        return y.reshape(b, n, self.query_dim)

    # Pure-JAX reference for verification.
    def reference(self, x, context=None):
        b, n, _ = x.shape
        context = x if context is None else context
        m = context.shape[1]
        h, d = self.heads, self.dim_head
        q = x @ self.w_q.T
        k = context @ self.w_k.T
        v = context @ self.w_v.T
        q = q.reshape(b, n, h, d).transpose(0, 2, 1, 3)
        k = k.reshape(b, m, h, d).transpose(0, 2, 1, 3)
        v = v.reshape(b, m, h, d).transpose(0, 2, 1, 3)
        s = jnp.einsum('bhnd,bhmd->bhnm', q, k) / math.sqrt(d)
        p = jax.nn.softmax(s, axis=-1)
        o = jnp.einsum('bhnm,bhmd->bhnd', p, v)
        o = o.transpose(0, 2, 1, 3).reshape(b, n, h * d)
        return o @ self.w_out.T + self.b_out


if __name__ == "__main__":
    key = jax.random.PRNGKey(0)
    k_mod, k_x, k_ctx = jax.random.split(key, 3)

    # Small shapes: batch=2, query tokens=16, query_dim=32,
    # context tokens=7 (non-multiple of kv tile -> exercises key masking),
    # context_dim=24, heads=2, dim_head=16.
    b, n, query_dim = 2, 16, 32
    m, context_dim = 7, 24
    heads, dim_head = 2, 16

    module = MemoryEfficientCrossAttentionPallas(
        query_dim=query_dim, context_dim=context_dim,
        heads=heads, dim_head=dim_head, key=k_mod)

    x = jax.random.normal(k_x, (b, n, query_dim), jnp.float32)
    context = jax.random.normal(k_ctx, (b, m, context_dim), jnp.float32)

    # Cross-attention path (fused KV, masked padded keys).
    out_cross = jax.block_until_ready(module(x, context))
    ref_cross = module.reference(x, context)
    assert out_cross.shape == (b, n, query_dim)
    err_cross = float(jnp.max(jnp.abs(out_cross - ref_cross)))
    assert err_cross < 2e-3, f"cross-attn mismatch vs reference: {err_cross}"

    # Self-attention path (fused QKV) on a module with context_dim == query_dim.
    module_self = MemoryEfficientCrossAttentionPallas(
        query_dim=query_dim, context_dim=None,
        heads=heads, dim_head=dim_head, key=k_mod)
    out_self = jax.block_until_ready(module_self(x))
    ref_self = module_self.reference(x)
    err_self = float(jnp.max(jnp.abs(out_self - ref_self)))
    assert err_self < 2e-3, f"self-attn mismatch vs reference: {err_self}"

    print("KERNEL_OK")
</pallas_src>

<mosaic_0001>
module attributes {stable_mosaic.version = 11 : i64} {
  func.func @_linear_kernel(%arg0: i32, %arg1: i32, %arg2: i32, %arg3: memref<32x128xf32, #tpu.memory_space<vmem>>, %arg4: memref<128x128xf32, #tpu.memory_space<vmem>>, %arg5: memref<1x128xf32, #tpu.memory_space<vmem>>, %arg6: memref<32x128xf32, #tpu.memory_space<vmem>>, %arg7: memref<32x128xf32, #tpu.memory_space<vmem>>) attributes {dimension_semantics = [#tpu.dimension_semantics<parallel>, #tpu.dimension_semantics<parallel>, #tpu.dimension_semantics<arbitrary>], iteration_bounds = array<i64: 1, 1, 1>, scalar_prefetch = 0 : i64, scratch_operands = 1 : i64, tpu.core_type = #tpu.core_type<tc>, window_params = [{transform_indices = @transform_0, window_bounds = array<i64: 32, 128>}, {transform_indices = @transform_1, window_bounds = array<i64: 128, 128>}, {transform_indices = @transform_2, window_bounds = array<i64: 1, 128>}, {transform_indices = @transform_3, window_bounds = array<i64: 32, 128>}]} {
    %c0_i32 = arith.constant 0 : i32
    %0 = arith.cmpi eq, %arg2, %c0_i32 : i32
    %1 = arith.extui %0 : i1 to i32
    %c0_i32_0 = arith.constant 0 : i32
    %2 = arith.cmpi ne, %1, %c0_i32_0 : i32
    scf.if %2 {
      %cst_10 = arith.constant 0.000000e+00 : f32
      %12 = vector.broadcast %cst_10 : f32 to vector<32x128xf32>
      %c0_11 = arith.constant 0 : index
      %c0_12 = arith.constant 0 : index
      %13 = vector.load %arg7[%c0_11, %c0_12] : memref<32x128xf32, #tpu.memory_space<vmem>>, vector<32x128xf32>
      tpu.vector_store %arg7[%c0_11, %c0_12], %12 {strides = array<i32>} : memref<32x128xf32, #tpu.memory_space<vmem>>, vector<32x128xf32>,
    } else {
    }
    %c0 = arith.constant 0 : index
    %c0_1 = arith.constant 0 : index
    %3 = vector.load %arg7[%c0, %c0_1] : memref<32x128xf32, #tpu.memory_space<vmem>>, vector<32x128xf32>
    %c0_2 = arith.constant 0 : index
    %c0_3 = arith.constant 0 : index
    %4 = vector.load %arg3[%c0_2, %c0_3] : memref<32x128xf32, #tpu.memory_space<vmem>>, vector<32x128xf32>
    %c0_4 = arith.constant 0 : index
    %c0_5 = arith.constant 0 : index
    %5 = vector.load %arg4[%c0_4, %c0_5] : memref<128x128xf32, #tpu.memory_space<vmem>>, vector<128x128xf32>
    %cst = arith.constant dense<0.000000e+00> : vector<32x128xf32>
    %6 = tpu.matmul %4, %5, %cst {dimension_numbers = #tpu.dot_dimension_numbers<[1], [0], [0], [1], [0, 0, 1, 1], [], []>} : vector<32x128xf32>, vector<128x128xf32>, vector<32x128xf32> -> vector<32x128xf32>
    %7 = arith.addf %3, %6 : vector<32x128xf32>
    %c0_6 = arith.constant 0 : index
    %c0_7 = arith.constant 0 : index
    %8 = vector.load %arg7[%c0_6, %c0_7] : memref<32x128xf32, #tpu.memory_space<vmem>>, vector<32x128xf32>
    tpu.vector_store %arg7[%c0_6, %c0_7], %7 {strides = array<i32>} : memref<32x128xf32, #tpu.memory_space<vmem>>, vector<32x128xf32>,
    %c0_i32_8 = arith.constant 0 : i32
    %9 = arith.cmpi eq, %arg2, %c0_i32_8 : i32
    %10 = arith.extui %9 : i1 to i32
    %c0_i32_9 = arith.constant 0 : i32
    %11 = arith.cmpi ne, %10, %c0_i32_9 : i32
    scf.if %11 {
      %c0_10 = arith.constant 0 : index
      %c0_11 = arith.constant 0 : index
      %12 = vector.load %arg7[%c0_10, %c0_11] : memref<32x128xf32, #tpu.memory_space<vmem>>, vector<32x128xf32>
      %c0_12 = arith.constant 0 : index
      %c0_13 = arith.constant 0 : index
      %13 = vector.load %arg5[%c0_12, %c0_13] : memref<1x128xf32, #tpu.memory_space<vmem>>, vector<1x128xf32>
      %14 = vector.broadcast %13 : vector<1x128xf32> to vector<32x128xf32>
      %15 = arith.addf %12, %14 : vector<32x128xf32>
      %c0_14 = arith.constant 0 : index
      %c0_15 = arith.constant 0 : index
      %16 = vector.load %arg6[%c0_14, %c0_15] : memref<32x128xf32, #tpu.memory_space<vmem>>, vector<32x128xf32>
      tpu.vector_store %arg6[%c0_14, %c0_15], %15 {strides = array<i32>} : memref<32x128xf32, #tpu.memory_space<vmem>>, vector<32x128xf32>,
    } else {
    }
    return
  }
  func.func @transform_0(%arg0: i32, %arg1: i32, %arg2: i32) -> (i32, i32) {
    %c0_i32 = arith.constant 0 : i32
    return %arg0, %arg2 : i32, i32
  }
  func.func @transform_1(%arg0: i32, %arg1: i32, %arg2: i32) -> (i32, i32) {
    %c0_i32 = arith.constant 0 : i32
    return %arg2, %arg1 : i32, i32
  }
  func.func @transform_2(%arg0: i32, %arg1: i32, %arg2: i32) -> (i32, i32) {
    %c0_i32 = arith.constant 0 : i32
    %c0_i32_0 = arith.constant 0 : i32
    return %c0_i32, %arg1 : i32, i32
  }
  func.func @transform_3(%arg0: i32, %arg1: i32, %arg2: i32) -> (i32, i32) {
    %c0_i32 = arith.constant 0 : i32
    return %arg0, %arg1 : i32, i32
  }
}

</mosaic_0001>

<llo_original>
// kernel: tpu_custom_call.1
$region0: #{tpu_custom_call.1}
  #allocation0 [shape = 'u32[]', space=smem, size = 0x4, offset = 0x4, fixed_abs, tag = 'smem constant byte address 0x4 - core index']
  #allocation1 [shape = 'u32[144,128]{1,0:T(1,128)}', space=vmem, size = 0x12000, scoped, tag = 'internal scratch']
  #allocation2 [shape = 'f32[32,128]{1,0:T(8,128)}', space=vmem, size = 0x4000, scoped, tag = 'scratch operand']
  %s0 = inlined_call_operand.hbm [shape: f32[32,128], index: 0, kind: input, shape index: {}]
  %s1 = inlined_call_operand.hbm [shape: f32[128,128], index: 1, kind: input, shape index: {}]
  %s2 = inlined_call_operand.vmem [shape: f32[1,128], index: 2, kind: input, shape index: {}]
  %s3 = inlined_call_operand.hbm [shape: f32[32,128], index: 3, kind: output, shape index: {}]
  %s4 = sld [smem:[#allocation0]]
  $region38: #{tpu_custom_call.1} parent=0
    _
  %s6 = ssub.s32 1, %s4
  %s7 = scalar_select 0, %s6, %s4
  $region1: #{tpu_custom_call.1} parent=0
    #allocation3 [shape = 'u8[16384]{0}', space=vmem, size = 0x4000, scoped, tag = 'input window, operand 0, single buffered']
    #allocation4 [shape = 's32[1]{0}', space=sflag, size = 0x4, scoped, tag = 'scoped memory for tpu_custom_call.1']
    #allocation5 [shape = 's32[1]{0}', space=sflag, size = 0x4, scoped, tag = 'scoped memory for tpu_custom_call.1']
    #allocation6 [shape = 'u8[65536]{0}', space=vmem, size = 0x10000, scoped, tag = 'input window, operand 1, single buffered']
    #allocation7 [shape = 's32[1]{0}', space=sflag, size = 0x4, scoped, tag = 'scoped memory for tpu_custom_call.1']
    #allocation8 [shape = 'u8[16384]{0}', space=vmem, size = 0x4000, scoped, tag = 'output window, operand 0, single buffered']
    %8 = vsyncpa [#allocation4], 0
    %9 = vsyncpa [#allocation7], 0
    %10 = vsyncpa [#allocation5], 0
    // Predicated region
    $region2: #{tpu_custom_call.1} parent=1 // pred_check
      _
    $region3: #{tpu_custom_call.1} parent=1 // pred_check_branch
      %12 = sbr.rel (0) target = $region5
    $region4: #{tpu_custom_call.1} parent=1 // pred_region
      %s14 = ssub.s32 512, 512
      %15 = vsyncadd [#allocation4], %s14
      %s16 = sshll.u32 [#allocation3], 4
      %s17 = int_to_ptr.vmem [resolvable:$true] %s16
      %22 = dma.hbm_to_vmem [thread:$0]  %s0, 512, %s17, [#allocation4], 128, 128, 8
    $region5: #{tpu_custom_call.1} parent=1 // pred_fallthru
      _
    // Predicated region
    $region6: #{tpu_custom_call.1} parent=1 // pred_check
      _
    $region7: #{tpu_custom_call.1} parent=1 // pred_check_branch
      %24 = sbr.rel (0) target = $region9
    $region8: #{tpu_custom_call.1} parent=1 // pred_region
      %s26 = ssub.s32 2048, 2048
      %27 = vsyncadd [#allocation7], %s26
      %s28 = sshll.u32 [#allocation6], 4
      %s29 = int_to_ptr.vmem [resolvable:$true] %s28
      %34 = dma.hbm_to_vmem [thread:$0]  %s1, 2048, %s29, [#allocation7], 128, 128, 8
    $region9: #{tpu_custom_call.1} parent=1 // pred_fallthru
      _
    // Predicated region
    $region10: #{tpu_custom_call.1} parent=1 // pred_check
      _
    $region11: #{tpu_custom_call.1} parent=1 // pred_check_branch
      %36 = sbr.rel (0) target = $region13
    $region12: #{tpu_custom_call.1} parent=1 // pred_region
      _
    $region13: #{tpu_custom_call.1} parent=1 // pred_fallthru
      _
    // Predicated region
    $region14: #{tpu_custom_call.1} parent=1 // pred_check
      _
    $region15: #{tpu_custom_call.1} parent=1 // pred_check_branch
      %38 = sbr.rel (0) target = $region17
    $region16: #{tpu_custom_call.1} parent=1 // pred_region
      %39 = dma.done [#allocation4], 512
    $region17: #{tpu_custom_call.1} parent=1 // pred_fallthru
      _
    // Predicated region
    $region18: #{tpu_custom_call.1} parent=1 // pred_check
      _
    $region19: #{tpu_custom_call.1} parent=1 // pred_check_branch
      %41 = sbr.rel (0) target = $region21
    $region20: #{tpu_custom_call.1} parent=1 // pred_region
      %42 = dma.done [#allocation7], 2048
    $region21: #{tpu_custom_call.1} parent=1 // pred_fallthru
      _
    %p43 = scmp.eq.s32.totalorder 0, 0
    // Predicated region
    $region22: #{tpu_custom_call.1} parent=1 // pred_check
      %p44 = pneg %p43
    $region23: #{tpu_custom_call.1} parent=1 // pred_check_branch
      %46 = sbr.rel (%p44) target = $region25
    $region24: #{tpu_custom_call.1} parent=1 // pred_region
      %47 = vst [vmem:[#allocation2] sm:$0xff] 0.0
      %48 = vst [vmem:[#allocation2 + $0x8] sm:$0xff] 0.0
      %49 = vst [vmem:[#allocation2 + $0x10] sm:$0xff] 0.0
      %50 = vst [vmem:[#allocation2 + $0x18] sm:$0xff] 0.0
    $region25: #{tpu_custom_call.1} parent=1 // pred_fallthru
      _
    %v51 = vld [vmem:[#allocation2] sm:$0xff]
    %v52 = vld [vmem:[#allocation2 + $0x8] sm:$0xff]
    %v53 = vld [vmem:[#allocation2 + $0x10] sm:$0xff]
    %v54 = vld [vmem:[#allocation2 + $0x18] sm:$0xff]
    %v55 = vld [vmem:[#allocation3] sm:$0xff]
    %v56 = vld [vmem:[#allocation3 + $0x8] sm:$0xff]
    %v57 = vld [vmem:[#allocation3 + $0x10] sm:$0xff]
    %v58 = vld [vmem:[#allocation3 + $0x18] sm:$0xff]
    %v59 = vld [vmem:[#allocation6] sm:$0xff]
    %v60 = vld [vmem:[#allocation6 + $0x8] sm:$0xff]
    %v61 = vld [vmem:[#allocation6 + $0x10] sm:$0xff]
    %v62 = vld [vmem:[#allocation6 + $0x18] sm:$0xff]
    %v63 = vld [vmem:[#allocation6 + $0x20] sm:$0xff]
    %v64 = vld [vmem:[#allocation6 + $0x28] sm:$0xff]
    %v65 = vld [vmem:[#allocation6 + $0x30] sm:$0xff]
    %v66 = vld [vmem:[#allocation6 + $0x38] sm:$0xff]
    %v67 = vld [vmem:[#allocation6 + $0x40] sm:$0xff]
    %v68 = vld [vmem:[#allocation6 + $0x48] sm:$0xff]
    %v69 = vld [vmem:[#allocation6 + $0x50] sm:$0xff]
    %v70 = vld [vmem:[#allocation6 + $0x58] sm:$0xff]
    %v71 = vld [vmem:[#allocation6 + $0x60] sm:$0xff]
    %v72 = vld [vmem:[#allocation6 + $0x68] sm:$0xff]
    %v73 = vld [vmem:[#allocation6 + $0x70] sm:$0xff]
    %v74 = vld [vmem:[#allocation6 + $0x78] sm:$0xff]
    %75 = vmatprep.subr.mxu0 0.0
    %76 = vmatpush1.msra.mxu0 %v74
    %77 = vmatprep.subr.mxu0 0.0
    %78 = vmatpush1.msra.mxu0 %v73
    %79 = vmatprep.subr.mxu0 0.0
    %80 = vmatpush1.msra.mxu0 %v72
    %81 = vmatprep.subr.mxu0 0.0
    %82 = vmatpush1.msra.mxu0 %v71
    %83 = vmatprep.subr.mxu0 0.0
    %84 = vmatpush1.msra.mxu0 %v70
    %85 = vmatprep.subr.mxu0 0.0
    %86 = vmatpush1.msra.mxu0 %v69
    %87 = vmatprep.subr.mxu0 0.0
    %88 = vmatpush1.msra.mxu0 %v68
    %89 = vmatprep.subr.mxu0 0.0
    %90 = vmatpush1.msra.mxu0 %v67
    %91 = vmatprep.subr.mxu0 0.0
    %92 = vmatpush1.msra.mxu0 %v66
    %93 = vmatprep.subr.mxu0 0.0
    %94 = vmatpush1.msra.mxu0 %v65
    %95 = vmatprep.subr.mxu0 0.0
    %96 = vmatpush1.msra.mxu0 %v64
    %97 = vmatprep.subr.mxu0 0.0
    %98 = vmatpush1.msra.mxu0 %v63
    %99 = vmatprep.subr.mxu0 0.0
    %100 = vmatpush1.msra.mxu0 %v62
    %101 = vmatprep.subr.mxu0 0.0
    %102 = vmatpush1.msra.mxu0 %v61
    %103 = vmatprep.subr.mxu0 0.0
    %104 = vmatpush1.msra.mxu0 %v60
    %105 = vmatprep.subr.mxu0 0.0
    %106 = vmatpush1.msra.mxu0 %v59
    %107 = vmatprep.subr.mxu0 0.0
    %108 = vmatpush2.msra.mxu0 0.0
    %109 = vmatprep.subr.mxu0 0.0
    %110 = vmatpush2.msra.mxu0 0.0
    %111 = vmatprep.subr.mxu0 0.0
    %112 = vmatpush2.msra.mxu0 0.0
    %113 = vmatprep.subr.mxu0 0.0
    %114 = vmatpush2.msra.mxu0 0.0
    %115 = vmatprep.subr.mxu0 0.0
    %116 = vmatpush2.msra.mxu0 0.0
    %117 = vmatprep.subr.mxu0 0.0
    %118 = vmatpush2.msra.mxu0 0.0
    %119 = vmatprep.subr.mxu0 0.0
    %120 = vmatpush2.msra.mxu0 0.0
    %121 = vmatprep.subr.mxu0 0.0
    %122 = vmatpush2.msra.mxu0 0.0
    %123 = vmatprep.subr.mxu0 0.0
    %124 = vmatpush2.msra.mxu0 0.0
    %125 = vmatprep.subr.mxu0 0.0
    %126 = vmatpush2.msra.mxu0 0.0
    %127 = vmatprep.subr.mxu0 0.0
    %128 = vmatpush2.msra.mxu0 0.0
    %129 = vmatprep.subr.mxu0 0.0
    %130 = vmatpush2.msra.mxu0 0.0
    %131 = vmatprep.subr.mxu0 0.0
    %132 = vmatpush2.msra.mxu0 0.0
    %133 = vmatprep.subr.mxu0 0.0
    %134 = vmatpush2.msra.mxu0 0.0
    %135 = vmatprep.subr.mxu0 0.0
    %136 = vmatpush2.msra.mxu0 0.0
    %137 = vmatprep.subr.mxu0 0.0
    %138 = vmatpush2.msra.mxu0 0.0
    %139 = vmatprep.mubr.f32.mxu0 0.0
    %140 = vmatmul.mubr.f32.gmra.mxu0 %v55
    %v141 = vpop.f32.mrf.mxu0
    %v142 = vadd.f32 0.0, %v141
    %v143 = vpop.f32.mrf.mxu0
    %144 = vmatprep.mubr.f32.mxu0 0.0
    %145 = vmatmul.mubr.f32.gmra.mxu0 %v56
    %v146 = vpop.f32.mrf.mxu0
    %v147 = vadd.f32 0.0, %v146
    %v148 = vpop.f32.mrf.mxu0
    %149 = vmatprep.mubr.f32.mxu0 0.0
    %150 = vmatmul.mubr.f32.gmra.mxu0 %v57
    %v151 = vpop.f32.mrf.mxu0
    %v152 = vadd.f32 0.0, %v151
    %v153 = vpop.f32.mrf.mxu0
    %154 = vmatprep.mubr.f32.mxu0 0.0
    %155 = vmatmul.mubr.f32.gmra.mxu0 %v58
    %v156 = vpop.f32.mrf.mxu0
    %v157 = vadd.f32 0.0, %v156
    %v158 = vpop.f32.mrf.mxu0
    %159 = vdwg.mxu0
    %v160 = vadd.f32 %v51, %v142
    %v161 = vadd.f32 %v52, %v147
    %v162 = vadd.f32 %v53, %v152
    %v163 = vadd.f32 %v54, %v157
    %164 = vst [vmem:[#allocation2] sm:$0xff] %v160
    %165 = vst [vmem:[#allocation2 + $0x8] sm:$0xff] %v161
    %166 = vst [vmem:[#allocation2 + $0x10] sm:$0xff] %v162
    %167 = vst [vmem:[#allocation2 + $0x18] sm:$0xff] %v163
    // Predicated region
    $region26: #{tpu_custom_call.1} parent=1 // pred_check
      %p168 = pneg %p43
    $region27: #{tpu_custom_call.1} parent=1 // pred_check_branch
      %170 = sbr.rel (%p168) target = $region29
    $region28: #{tpu_custom_call.1} parent=1 // pred_region
      %v171 = vld [vmem:[#allocation2] sm:$0xff]
      %v172 = vld [vmem:[#allocation2 + $0x8] sm:$0xff]
      %v173 = vld [vmem:[#allocation2 + $0x10] sm:$0xff]
      %v174 = vld [vmem:[#allocation2 + $0x18] sm:$0xff]
      %v175 = vld [vmem:[%s2] sm:$0x1]
      %v177 = vlaneseq
      %v178 = vshrl.u32 %v177, 7
      %v179 = vsub.s32 0, %v178
      %v180 = vrot.slane %v175, %v179
      %v182 = vadd.f32 %v171, %v180
      %v183 = vadd.f32 %v172, %v180
      %v184 = vadd.f32 %v173, %v180
      %v185 = vadd.f32 %v174, %v180
      %186 = vst [vmem:[#allocation8] sm:$0xff] %v182
      %187 = vst [vmem:[#allocation8 + $0x8] sm:$0xff] %v183
      %188 = vst [vmem:[#allocation8 + $0x10] sm:$0xff] %v184
      %189 = vst [vmem:[#allocation8 + $0x18] sm:$0xff] %v185
    $region29: #{tpu_custom_call.1} parent=1 // pred_fallthru
      _
    // Predicated region
    $region30: #{tpu_custom_call.1} parent=1 // pred_check
      _
    $region31: #{tpu_custom_call.1} parent=1 // pred_check_branch
      %191 = sbr.rel (0) target = $region33
    $region32: #{tpu_custom_call.1} parent=1 // pred_region
      %s193 = ssub.s32 512, 512
      %194 = vsyncadd [#allocation5], %s193
      %s195 = sshll.u32 [#allocation8], 4
      %s196 = int_to_ptr.vmem [resolvable:$true] %s195
      %201 = dma.vmem_to_hbm [thread:$0]  %s196, 512, %s3, [#allocation5], 128, 128, 8
    $region33: #{tpu_custom_call.1} parent=1 // pred_fallthru
      _
    // Predicated region
    $region34: #{tpu_custom_call.1} parent=1 // pred_check
      _
    $region35: #{tpu_custom_call.1} parent=1 // pred_check_branch
      %203 = sbr.rel (0) target = $region37
    $region36: #{tpu_custom_call.1} parent=1 // pred_region
      %204 = dma.done [#allocation5], 512
    $region37: #{tpu_custom_call.1} parent=1 // pred_fallthru
      _
    %205 = vsyncpa [#allocation4], 1
    %206 = vsyncpa [#allocation7], 1
    %207 = vsyncpa [#allocation5], 1

</llo_original>
